<compile_context>
chip_gen: v7x
topology: tpu7x:2x2x1
jax: 0.10.0
libtpu: 0.0.40
codegen_flags: <defaults>
</compile_context>

<pallas_src>
import functools

import jax
import jax.numpy as jnp
from jax import lax
from jax.experimental import pallas as pl
from jax.experimental.pallas import tpu as pltpu

_LANE = 128
_TARGET_TILE_BYTES = 2 * 1024 * 1024   # per input, per pipeline buffer
_MIN_TILES_FOR_CORE_SPLIT = 8          # only split across TCs when worth it

_ARBITRARY = getattr(pltpu, "ARBITRARY", "arbitrary")
_CORE_PARALLEL = getattr(pltpu, "CORE_PARALLEL", "parallel")


def _cdiv(a, b):
    return -(-a // b)


def _round_up(a, m):
    return _cdiv(a, m) * m


def _min_sublane_multiple(dtype):
    # f32 -> 8 rows/vreg, bf16 -> 16, int8/fp8 -> 32 (sub-32-bit packs sublanes)
    return max(8, 32 // jnp.dtype(dtype).itemsize)


def _num_tensorcores():
    # Only v7x (2 TensorCores per chip/device) benefits from the core split;
    # v5e / v6e have a single TC where the extra grid axis is pure overhead.
    try:
        kind = jax.devices()[0].device_kind.lower()
    except Exception:
        return 1
    return 2 if ("v7" in kind or "7x" in kind) else 1


def _sublane_partial(v):
    """(tile_rows, 128) native-dtype tile -> (8, 128) f32 partial sums.

    Pure VPU work: the reshape splits the sublane dim into vreg groups (free)
    and the axis-0 sum is elementwise vreg adds with f32 accumulation.
    """
    rows = v.shape[0]
    return jnp.sum(v.astype(jnp.float32).reshape(rows // 8, 8, _LANE), axis=0)


def _dice_partial_kernel(x_ref, t_ref, inter_ref, sum_ref, *,
                         tile_rows, steps_per_core, rows, full_tiles, all_full):
    c = pl.program_id(0)   # core axis
    s = pl.program_id(1)   # row-tile (reduction) axis

    # Output blocks double as per-core accumulators (same block index across
    # the step axis): zero them at the start of each core's sweep.
    @pl.when(s == 0)
    def _init():
        inter_ref[...] = jnp.zeros_like(inter_ref)
        sum_ref[...] = jnp.zeros_like(sum_ref)

    # Native-dtype VPU math (bf16 stays bf16 on v6e/v7x); partials are f32.
    x = x_ref[...]
    t = t_ref[...]
    xt = x * t
    xs = x + t

    if all_full:
        # Every grid step maps to a fully valid tile: pure vmul/vadd hot path,
        # no masking code emitted at all.
        inter_ref[...] += _sublane_partial(xt)
        sum_ref[...] += _sublane_partial(xs)
    else:
        tile_idx = c * steps_per_core + s

        @pl.when(tile_idx < full_tiles)
        def _full_tile():
            inter_ref[...] += _sublane_partial(xt)
            sum_ref[...] += _sublane_partial(xs)

        @pl.when(tile_idx >= full_tiles)
        def _ragged_tile():
            # Partial last tile and any clamped duplicate tile: mask rows
            # beyond the valid range with a select (never a multiply) so
            # garbage/NaN in edge rows contributes exactly zero.
            row0 = tile_idx * tile_rows
            rid = row0 + lax.broadcasted_iota(jnp.int32, (tile_rows, _LANE), 0)
            valid = rid < rows
            zero = jnp.zeros_like(xt)
            inter_ref[...] += _sublane_partial(jnp.where(valid, xt, zero))
            sum_ref[...] += _sublane_partial(jnp.where(valid, xs, zero))


def dice_loss(inp, tgt, smooth=1.0):
    """Dice loss matching PyTorch DiceLoss.forward semantics."""
    assert inp.shape == tgt.shape, "input/target must have identical shapes"
    x = jnp.ravel(inp)   # free reshape; keep native dtype for HBM streaming
    t = jnp.ravel(tgt)
    n = x.shape[0]

    # Lane-align only if needed (H*W of segmentation inputs is virtually
    # always a multiple of 128, so the common path is a zero-copy reshape).
    # TODO(synk): the rare non-128-aligned path still materialises one padded
    # copy; avoiding it would need 1-D edge blocks + an in-kernel lane mask.
    rem = n % _LANE
    if rem:
        pad = _LANE - rem
        x = jnp.pad(x, (0, pad))
        t = jnp.pad(t, (0, pad))

    rows = x.shape[0] // _LANE
    x2 = x.reshape(rows, _LANE)
    t2 = t.reshape(rows, _LANE)

    mult = max(_min_sublane_multiple(x.dtype), _min_sublane_multiple(t.dtype))
    itemsize = max(jnp.dtype(x.dtype).itemsize, jnp.dtype(t.dtype).itemsize)
    max_rows = max(mult, _TARGET_TILE_BYTES // (_LANE * itemsize))
    tile_rows = min(max_rows, _round_up(rows, mult))
    num_tiles = _cdiv(rows, tile_rows)
    full_tiles = rows // tile_rows      # tiles with no ragged row tail

    ncores = _num_tensorcores()
    if num_tiles < _MIN_TILES_FOR_CORE_SPLIT:
        ncores = 1                      # core split not worth the dead-tile tax
    steps_per_core = _cdiv(num_tiles, ncores)
    all_full = full_tiles == ncores * steps_per_core

    def in_map(c, s):
        # Clamp so a duplicate step (odd tile count on the 2-core path) never
        # DMAs out of bounds; it is fully masked inside the kernel.
        return (jnp.minimum(c * steps_per_core + s, num_tiles - 1), 0)

    def out_map(c, s):
        return (c, 0)

    kernel = functools.partial(
        _dice_partial_kernel,
        tile_rows=tile_rows,
        steps_per_core=steps_per_core,
        rows=rows,
        full_tiles=full_tiles,
        all_full=all_full,
    )

    inter_p, sum_p = pl.pallas_call(
        kernel,
        out_shape=(
            jax.ShapeDtypeStruct((ncores * 8, _LANE), jnp.float32),
            jax.ShapeDtypeStruct((ncores * 8, _LANE), jnp.float32),
        ),
        grid_spec=pltpu.PrefetchScalarGridSpec(
            num_scalar_prefetch=0,
            grid=(ncores, steps_per_core),
            in_specs=[
                pl.BlockSpec((tile_rows, _LANE), in_map),
                pl.BlockSpec((tile_rows, _LANE), in_map),
            ],
            out_specs=[
                pl.BlockSpec((8, _LANE), out_map),
                pl.BlockSpec((8, _LANE), out_map),
            ],
        ),
        compiler_params=pltpu.CompilerParams(
            dimension_semantics=(
                _CORE_PARALLEL if ncores > 1 else _ARBITRARY,
                _ARBITRARY,
            ),
            vmem_limit_bytes=32 * 1024 * 1024,
        ),
    )(x2, t2)

    intersection = jnp.sum(inter_p)
    total = jnp.sum(sum_p)
    smooth = jnp.float32(smooth)
    return jnp.float32(1.0) - (jnp.float32(2.0) * intersection + smooth) / (total + smooth)


def _dice_loss_ref(inp, tgt, smooth=1.0):
    iflat = jnp.ravel(inp).astype(jnp.float32)
    tflat = jnp.ravel(tgt).astype(jnp.float32)
    intersection = jnp.sum(iflat * tflat)
    return 1.0 - (2.0 * intersection + smooth) / (jnp.sum(iflat) + jnp.sum(tflat) + smooth)


if __name__ == "__main__":
    key = jax.random.PRNGKey(0)
    k1, k2, k3, k4, k5, k6 = jax.random.split(key, 6)

    # Main case: small NCHW segmentation-like shapes, f32.
    x = jax.nn.sigmoid(jax.random.normal(k1, (2, 4, 16, 16), dtype=jnp.float32))
    y = (jax.random.uniform(k2, (2, 4, 16, 16)) > 0.5).astype(jnp.float32)
    loss = jax.block_until_ready(dice_loss(x, y))
    ref = jax.block_until_ready(_dice_loss_ref(x, y))
    assert jnp.allclose(loss, ref, atol=1e-5, rtol=1e-5), (loss, ref)

    # Ragged case: flat size not a multiple of 8*128 -> exercises the
    # in-kernel select masking of the partial last row tile.
    xr = jax.nn.sigmoid(jax.random.normal(k3, (1, 3, 11, 23), dtype=jnp.float32))
    yr = (jax.random.uniform(k4, (1, 3, 11, 23)) > 0.5).astype(jnp.float32)
    loss_r = jax.block_until_ready(dice_loss(xr, yr))
    ref_r = jax.block_until_ready(_dice_loss_ref(xr, yr))
    assert jnp.allclose(loss_r, ref_r, atol=1e-5, rtol=1e-5), (loss_r, ref_r)

    # bf16 case: native-dtype HBM streaming with bf16 VPU math + f32 partials.
    xb = x.astype(jnp.bfloat16)
    yb = y.astype(jnp.bfloat16)
    loss_b = jax.block_until_ready(dice_loss(xb, yb))
    ref_b = jax.block_until_ready(_dice_loss_ref(xb, yb))
    assert jnp.allclose(loss_b, ref_b, atol=2e-2, rtol=2e-2), (loss_b, ref_b)

    # Multi-tile case: big enough for >1 grid step (resident-output
    # accumulation + ragged final tile on a non-trivial grid).
    xm = jax.nn.sigmoid(jax.random.normal(k5, (3, 1, 512, 512), dtype=jnp.float32))
    ym = (jax.random.uniform(k6, (3, 1, 512, 512)) > 0.5).astype(jnp.float32)
    loss_m = jax.block_until_ready(dice_loss(xm, ym))
    ref_m = jax.block_until_ready(_dice_loss_ref(xm, ym))
    assert jnp.allclose(loss_m, ref_m, atol=1e-4, rtol=1e-4), (loss_m, ref_m)

    print("KERNEL_OK")
</pallas_src>

<mosaic_0001>
module attributes {stable_mosaic.version = 11 : i64} {
  func.func @_dice_partial_kernel(%arg0: i32, %arg1: i32, %arg2: memref<16x128xf32, #tpu.memory_space<vmem>>, %arg3: memref<16x128xf32, #tpu.memory_space<vmem>>, %arg4: memref<8x128xf32, #tpu.memory_space<vmem>>, %arg5: memref<8x128xf32, #tpu.memory_space<vmem>>) attributes {dimension_semantics = [#tpu.dimension_semantics<arbitrary>, #tpu.dimension_semantics<arbitrary>], iteration_bounds = array<i64: 1, 1>, scalar_prefetch = 0 : i64, scratch_operands = 0 : i64, tpu.core_type = #tpu.core_type<tc>, window_params = [{transform_indices = @transform_0, window_bounds = array<i64: 16, 128>}, {transform_indices = @transform_1, window_bounds = array<i64: 16, 128>}, {transform_indices = @transform_2, window_bounds = array<i64: 8, 128>}, {transform_indices = @transform_3, window_bounds = array<i64: 8, 128>}]} {
    %c0_i32 = arith.constant 0 : i32
    %0 = arith.cmpi eq, %arg1, %c0_i32 : i32
    %1 = arith.extui %0 : i1 to i32
    %c0_i32_0 = arith.constant 0 : i32
    %2 = arith.cmpi ne, %1, %c0_i32_0 : i32
    scf.if %2 {
      %cst_13 = arith.constant 0.000000e+00 : f32
      %17 = vector.broadcast %cst_13 : f32 to vector<8x128xf32>
      %c0_14 = arith.constant 0 : index
      %c0_15 = arith.constant 0 : index
      %18 = vector.load %arg4[%c0_14, %c0_15] : memref<8x128xf32, #tpu.memory_space<vmem>>, vector<8x128xf32>
      tpu.vector_store %arg4[%c0_14, %c0_15], %17 {strides = array<i32>} : memref<8x128xf32, #tpu.memory_space<vmem>>, vector<8x128xf32>,
      %cst_16 = arith.constant 0.000000e+00 : f32
      %19 = vector.broadcast %cst_16 : f32 to vector<8x128xf32>
      %c0_17 = arith.constant 0 : index
      %c0_18 = arith.constant 0 : index
      %20 = vector.load %arg5[%c0_17, %c0_18] : memref<8x128xf32, #tpu.memory_space<vmem>>, vector<8x128xf32>
      tpu.vector_store %arg5[%c0_17, %c0_18], %19 {strides = array<i32>} : memref<8x128xf32, #tpu.memory_space<vmem>>, vector<8x128xf32>,
    } else {
    }
    %c0 = arith.constant 0 : index
    %c0_1 = arith.constant 0 : index
    %3 = vector.load %arg2[%c0, %c0_1] : memref<16x128xf32, #tpu.memory_space<vmem>>, vector<16x128xf32>
    %c0_2 = arith.constant 0 : index
    %c0_3 = arith.constant 0 : index
    %4 = vector.load %arg3[%c0_2, %c0_3] : memref<16x128xf32, #tpu.memory_space<vmem>>, vector<16x128xf32>
    %5 = arith.mulf %3, %4 : vector<16x128xf32>
    %6 = arith.addf %3, %4 : vector<16x128xf32>
    %c0_4 = arith.constant 0 : index
    %c0_5 = arith.constant 0 : index
    %7 = vector.load %arg4[%c0_4, %c0_5] : memref<8x128xf32, #tpu.memory_space<vmem>>, vector<8x128xf32>
    %8 = vector.shape_cast %5 : vector<16x128xf32> to vector<2x8x128xf32>
    %cst = arith.constant dense<0.000000e+00> : vector<8x128xf32>
    %9 = vector.multi_reduction <add>, %8, %cst [0] : vector<2x8x128xf32> to vector<8x128xf32>
    %10 = arith.addf %7, %9 : vector<8x128xf32>
    %c0_6 = arith.constant 0 : index
    %c0_7 = arith.constant 0 : index
    %11 = vector.load %arg4[%c0_6, %c0_7] : memref<8x128xf32, #tpu.memory_space<vmem>>, vector<8x128xf32>
    tpu.vector_store %arg4[%c0_6, %c0_7], %10 {strides = array<i32>} : memref<8x128xf32, #tpu.memory_space<vmem>>, vector<8x128xf32>,
    %c0_8 = arith.constant 0 : index
    %c0_9 = arith.constant 0 : index
    %12 = vector.load %arg5[%c0_8, %c0_9] : memref<8x128xf32, #tpu.memory_space<vmem>>, vector<8x128xf32>
    %13 = vector.shape_cast %6 : vector<16x128xf32> to vector<2x8x128xf32>
    %cst_10 = arith.constant dense<0.000000e+00> : vector<8x128xf32>
    %14 = vector.multi_reduction <add>, %13, %cst_10 [0] : vector<2x8x128xf32> to vector<8x128xf32>
    %15 = arith.addf %12, %14 : vector<8x128xf32>
    %c0_11 = arith.constant 0 : index
    %c0_12 = arith.constant 0 : index
    %16 = vector.load %arg5[%c0_11, %c0_12] : memref<8x128xf32, #tpu.memory_space<vmem>>, vector<8x128xf32>
    tpu.vector_store %arg5[%c0_11, %c0_12], %15 {strides = array<i32>} : memref<8x128xf32, #tpu.memory_space<vmem>>, vector<8x128xf32>,
    return
  }
  func.func @transform_0(%arg0: i32, %arg1: i32) -> (i32, i32) {
    %c1_i32 = arith.constant 1 : i32
    %0 = arith.muli %arg0, %c1_i32 : i32
    %1 = arith.addi %0, %arg1 : i32
    %c0_i32 = arith.constant 0 : i32
    %2 = arith.minsi %1, %c0_i32 : i32
    %c0_i32_0 = arith.constant 0 : i32
    %c0_i32_1 = arith.constant 0 : i32
    return %2, %c0_i32_0 : i32, i32
  }
  func.func @transform_1(%arg0: i32, %arg1: i32) -> (i32, i32) {
    %c1_i32 = arith.constant 1 : i32
    %0 = arith.muli %arg0, %c1_i32 : i32
    %1 = arith.addi %0, %arg1 : i32
    %c0_i32 = arith.constant 0 : i32
    %2 = arith.minsi %1, %c0_i32 : i32
    %c0_i32_0 = arith.constant 0 : i32
    %c0_i32_1 = arith.constant 0 : i32
    return %2, %c0_i32_0 : i32, i32
  }
  func.func @transform_2(%arg0: i32, %arg1: i32) -> (i32, i32) {
    %c0_i32 = arith.constant 0 : i32
    %c0_i32_0 = arith.constant 0 : i32
    return %arg0, %c0_i32 : i32, i32
  }
  func.func @transform_3(%arg0: i32, %arg1: i32) -> (i32, i32) {
    %c0_i32 = arith.constant 0 : i32
    %c0_i32_0 = arith.constant 0 : i32
    return %arg0, %c0_i32 : i32, i32
  }
}

</mosaic_0001>

<llo_original>
// kernel: tpu_custom_call.1
$region0: #{tpu_custom_call.1}
  #allocation0 [shape = 'u32[]', space=smem, size = 0x4, offset = 0x4, fixed_abs, tag = 'smem constant byte address 0x4 - core index']
  #allocation1 [shape = 'u32[144,128]{1,0:T(1,128)}', space=vmem, size = 0x12000, scoped, tag = 'internal scratch']
  %s0 = inlined_call_operand.hbm [shape: f32[16,128], index: 0, kind: input, shape index: {}]
  %s1 = inlined_call_operand.hbm [shape: f32[16,128], index: 1, kind: input, shape index: {}]
  %s2 = inlined_call_operand.hbm [shape: f32[8,128], index: 2, kind: output, shape index: {0}]
  %s3 = inlined_call_operand.hbm [shape: f32[8,128], index: 3, kind: output, shape index: {1}]
  %4 = xla_tuple %s2, %s3
  %s5 = sld [smem:[#allocation0]]
  $region38: #{tpu_custom_call.1} parent=0
    _
  %s7 = ssub.s32 1, %s5
  %s8 = scalar_select 0, %s7, %s5
  $region1: #{tpu_custom_call.1} parent=0
    #allocation2 [shape = 'u8[8192]{0}', space=vmem, size = 0x2000, scoped, tag = 'input window, operand 0, single buffered']
    #allocation3 [shape = 's32[1]{0}', space=sflag, size = 0x4, scoped, tag = 'scoped memory for tpu_custom_call.1']
    #allocation4 [shape = 's32[1]{0}', space=sflag, size = 0x4, scoped, tag = 'scoped memory for tpu_custom_call.1']
    #allocation5 [shape = 'u8[8192]{0}', space=vmem, size = 0x2000, scoped, tag = 'input window, operand 1, single buffered']
    #allocation6 [shape = 's32[1]{0}', space=sflag, size = 0x4, scoped, tag = 'scoped memory for tpu_custom_call.1']
    #allocation7 [shape = 'u8[4096]{0}', space=vmem, size = 0x1000, scoped, tag = 'output window, operand 0, single buffered']
    #allocation8 [shape = 'u8[4096]{0}', space=vmem, size = 0x1000, scoped, tag = 'output window, operand 1, single buffered']
    #allocation9 [shape = 's32[1]{0}', space=sflag, size = 0x4, scoped, tag = 'scoped memory for tpu_custom_call.1']
    %9 = vsyncpa [#allocation3], 0
    %10 = vsyncpa [#allocation6], 0
    %11 = vsyncpa [#allocation4], 0
    %12 = vsyncpa [#allocation9], 0
    // Predicated region
    $region2: #{tpu_custom_call.1} parent=1 // pred_check
      _
    $region3: #{tpu_custom_call.1} parent=1 // pred_check_branch
      %14 = sbr.rel (0) target = $region5
    $region4: #{tpu_custom_call.1} parent=1 // pred_region
      %s15 = sadd.s32 0, 0
      %p16 = scmp.lt.s32.totalorder %s15, 0
      %s17 = scalar_select %p16, %s15, 0
      %s18 = smul.u32 2, %s17
      %s20 = ssub.s32 256, 256
      %21 = vsyncadd [#allocation3], %s20
      %s22 = smul.addr %s18, 128
      %s23 = scalar_lea.hbm %s0, %s22
      %s24 = sshll.u32 [#allocation2], 4
      %s25 = int_to_ptr.vmem [resolvable:$true] %s24
      %30 = dma.hbm_to_vmem [thread:$0]  %s23, 256, %s25, [#allocation3], 128, 128, 8
    $region5: #{tpu_custom_call.1} parent=1 // pred_fallthru
      _
    // Predicated region
    $region6: #{tpu_custom_call.1} parent=1 // pred_check
      _
    $region7: #{tpu_custom_call.1} parent=1 // pred_check_branch
      %32 = sbr.rel (0) target = $region9
    $region8: #{tpu_custom_call.1} parent=1 // pred_region
      %s33 = sadd.s32 0, 0
      %p34 = scmp.lt.s32.totalorder %s33, 0
      %s35 = scalar_select %p34, %s33, 0
      %s36 = smul.u32 2, %s35
      %s38 = ssub.s32 256, 256
      %39 = vsyncadd [#allocation6], %s38
      %s40 = smul.addr %s36, 128
      %s41 = scalar_lea.hbm %s1, %s40
      %s42 = sshll.u32 [#allocation5], 4
      %s43 = int_to_ptr.vmem [resolvable:$true] %s42
      %48 = dma.hbm_to_vmem [thread:$0]  %s41, 256, %s43, [#allocation6], 128, 128, 8
    $region9: #{tpu_custom_call.1} parent=1 // pred_fallthru
      _
    // Predicated region
    $region10: #{tpu_custom_call.1} parent=1 // pred_check
      _
    $region11: #{tpu_custom_call.1} parent=1 // pred_check_branch
      %50 = sbr.rel (0) target = $region13
    $region12: #{tpu_custom_call.1} parent=1 // pred_region
      %51 = dma.done [#allocation3], 256
    $region13: #{tpu_custom_call.1} parent=1 // pred_fallthru
      _
    // Predicated region
    $region14: #{tpu_custom_call.1} parent=1 // pred_check
      _
    $region15: #{tpu_custom_call.1} parent=1 // pred_check_branch
      %53 = sbr.rel (0) target = $region17
    $region16: #{tpu_custom_call.1} parent=1 // pred_region
      %54 = dma.done [#allocation6], 256
    $region17: #{tpu_custom_call.1} parent=1 // pred_fallthru
      _
    %s55 = sadd.s32 0, 0
    %p56 = scmp.lt.s32.totalorder %s55, 0
    %s57 = scalar_select %p56, %s55, 0
    %s58 = smul.u32 2, %s57
    %s59 = sadd.s32 0, 0
    %p60 = scmp.lt.s32.totalorder %s59, 0
    %s61 = scalar_select %p60, %s59, 0
    %s62 = smul.u32 2, %s61
    %p63 = scmp.eq.s32.totalorder 0, 0
    // Predicated region
    $region18: #{tpu_custom_call.1} parent=1 // pred_check
      %p64 = pneg %p63
    $region19: #{tpu_custom_call.1} parent=1 // pred_check_branch
      %66 = sbr.rel (%p64) target = $region21
    $region20: #{tpu_custom_call.1} parent=1 // pred_region
      %67 = vst [vmem:[#allocation7] sm:$0xff] 0.0
      %68 = vst [vmem:[#allocation8] sm:$0xff] 0.0
    $region21: #{tpu_custom_call.1} parent=1 // pred_fallthru
      _
    %v69 = vld [vmem:[#allocation2] sm:$0xff]
    %v70 = vld [vmem:[#allocation2 + $0x8] sm:$0xff]
    %v71 = vld [vmem:[#allocation5] sm:$0xff]
    %v72 = vld [vmem:[#allocation5 + $0x8] sm:$0xff]
    %v73 = vmul.f32 %v69, %v71
    %v74 = vmul.f32 %v70, %v72
    %v75 = vadd.f32 %v69, %v71
    %v76 = vadd.f32 %v70, %v72
    %v77 = vld [vmem:[#allocation7] sm:$0xff]
    %v78 = vadd.f32 %v73, %v74
    %v79 = vadd.f32 %v77, %v78
    %80 = vst [vmem:[#allocation7] sm:$0xff] %v79
    %v81 = vld [vmem:[#allocation8] sm:$0xff]
    %v82 = vadd.f32 %v75, %v76
    %v83 = vadd.f32 %v81, %v82
    %84 = vst [vmem:[#allocation8] sm:$0xff] %v83
    // Predicated region
    $region22: #{tpu_custom_call.1} parent=1 // pred_check
      _
    $region23: #{tpu_custom_call.1} parent=1 // pred_check_branch
      %86 = sbr.rel (0) target = $region25
    $region24: #{tpu_custom_call.1} parent=1 // pred_region
      %s88 = ssub.s32 128, 128
      %89 = vsyncadd [#allocation4], %s88
      %s91 = sshll.u32 [#allocation7], 4
      %s92 = int_to_ptr.vmem [resolvable:$true] %s91
      %94 = dma.vmem_to_hbm [thread:$0]  %s92, 128, %s2, [#allocation4]
    $region25: #{tpu_custom_call.1} parent=1 // pred_fallthru
      _
    // Predicated region
    $region26: #{tpu_custom_call.1} parent=1 // pred_check
      _
    $region27: #{tpu_custom_call.1} parent=1 // pred_check_branch
      %96 = sbr.rel (0) target = $region29
    $region28: #{tpu_custom_call.1} parent=1 // pred_region
      %s98 = ssub.s32 128, 128
      %99 = vsyncadd [#allocation9], %s98
      %s101 = sshll.u32 [#allocation8], 4
      %s102 = int_to_ptr.vmem [resolvable:$true] %s101
      %104 = dma.vmem_to_hbm [thread:$0]  %s102, 128, %s3, [#allocation9]
    $region29: #{tpu_custom_call.1} parent=1 // pred_fallthru
      _
    // Predicated region
    $region30: #{tpu_custom_call.1} parent=1 // pred_check
      _
    $region31: #{tpu_custom_call.1} parent=1 // pred_check_branch
      %106 = sbr.rel (0) target = $region33
    $region32: #{tpu_custom_call.1} parent=1 // pred_region
      %107 = dma.done [#allocation4], 128
    $region33: #{tpu_custom_call.1} parent=1 // pred_fallthru
      _
    // Predicated region
    $region34: #{tpu_custom_call.1} parent=1 // pred_check
      _
    $region35: #{tpu_custom_call.1} parent=1 // pred_check_branch
      %109 = sbr.rel (0) target = $region37
    $region36: #{tpu_custom_call.1} parent=1 // pred_region
      %110 = dma.done [#allocation9], 128
    $region37: #{tpu_custom_call.1} parent=1 // pred_fallthru
      _
    %111 = vsyncpa [#allocation3], 1
    %112 = vsyncpa [#allocation6], 1
    %113 = vsyncpa [#allocation4], 1
    %114 = vsyncpa [#allocation9], 1

</llo_original>
